<compile_context>
chip_gen: v7x
topology: tpu7x:2x2x1
jax: 0.10.0
libtpu: 0.0.40
codegen_flags: <defaults>
</compile_context>

<pallas_src>
from typing import NamedTuple, Tuple

import jax
import jax.numpy as jnp
from jax.experimental import pallas as pl
from jax.experimental.pallas import tpu as pltpu


def _round_up(x, m):
    return (x + m - 1) // m * m


class NLATables(NamedTuple):
    table: jax.Array                 # (R_total, C_pad) f32 block-diagonal stacked tables
    row_offsets: Tuple[int, ...]     # static per-field row offset into `table`
    n_idx: int                       # number of index fields (2 paths / 4 no-paths)
    out_cols: int                    # true output width C (3*D or 4*D)
    padded_cols: int                 # C rounded up to a multiple of 128


def build_nla_tables(params, *, use_paths: bool) -> NLATables:
    """One-time table prep (hoisted out of the per-call forward path)."""
    d = params["user"].shape[1]
    if use_paths:
        fields = [("user", 0), ("recipe", 1)]
        c = 3 * d
    else:
        fields = [("user", 0), ("recipe", 1), ("ingredient", 2), ("nutrition", 3)]
        c = 4 * d
    c_pad = _round_up(c, 128)

    blocks, offsets, row_off = [], [], 0
    for name, col in fields:
        tbl = params[name].astype(jnp.float32)
        r = tbl.shape[0]
        blk = jnp.zeros((r, c_pad), jnp.float32)
        blk = blk.at[:, col * d:(col + 1) * d].set(tbl)
        if use_paths and name == "user":
            # weighted_attention = sum(user.unsqueeze(1)/D, dim=1) == user/D, pre-scaled
            # and fused into cols 2D:3D of the SAME rows (no extra table rows / compares).
            blk = blk.at[:, 2 * d:3 * d].set(tbl * (1.0 / d))
        blocks.append(blk)
        offsets.append(row_off)
        row_off += r
    table = jnp.concatenate(blocks, axis=0)
    return NLATables(table=table, row_offsets=tuple(offsets),
                     n_idx=len(fields), out_cols=c, padded_cols=c_pad)


def _make_kernel(row_offsets):
    def kernel(idx_ref, tbl_ref, out_ref):
        idx = idx_ref[...]                                        # (TB, n_idx) int32
        tb = idx.shape[0]
        r_total = tbl_ref.shape[0]
        # Single iota shared by all field compares (JAX does not CSE broadcasts).
        row_ids = jax.lax.broadcasted_iota(jnp.int32, (tb, r_total), 1)
        hot = None
        for f, off in enumerate(row_offsets):
            sel = row_ids == (idx[:, f:f + 1] + off)              # fields occupy disjoint rows
            hot = sel if hot is None else jnp.logical_or(hot, sel)
        # One block-diagonal MXU matmul emits the whole concatenated row;
        # single lane-dense (128-multiple) store.
        out_ref[...] = jnp.dot(hot.astype(tbl_ref.dtype), tbl_ref[...],
                               preferred_element_type=jnp.float32)
    return kernel


def nla_forward(tables: NLATables, uid, rid, ing=None, nut=None, *,
                max_batch_tile: int = 1024):
    if tables.n_idx == 2:
        idx_fields = (uid, rid)
    else:
        idx_fields = (uid, rid, ing, nut)
    idx = jnp.stack([f.astype(jnp.int32) for f in idx_fields], axis=1)   # (B, n_idx)

    b = idx.shape[0]
    c_pad = tables.padded_cols

    # Sublane-dense batch tile; >=2 grid steps when B > 8 (v7x megacore), big tiles for big B.
    # No batch padding: Pallas clips the trailing partial block.
    if b <= 8:
        tb = b
    else:
        tb = min(max_batch_tile, _round_up(pl.cdiv(b, 2), 8))
    grid = (pl.cdiv(b, tb),)

    out = pl.pallas_call(
        _make_kernel(tables.row_offsets),
        grid_spec=pltpu.PrefetchScalarGridSpec(
            num_scalar_prefetch=0,
            grid=grid,
            in_specs=[
                pl.BlockSpec((tb, tables.n_idx), lambda i: (i, 0)),
                # Constant index_map => stacked table DMA'd once, VMEM-resident.
                pl.BlockSpec(tables.table.shape, lambda i: (0, 0)),
            ],
            out_specs=pl.BlockSpec((tb, c_pad), lambda i: (i, 0)),
        ),
        out_shape=jax.ShapeDtypeStruct((b, c_pad), jnp.float32),
        compiler_params=pltpu.CompilerParams(
            dimension_semantics=("parallel",)),
    )(idx, tables.table)

    if c_pad != tables.out_cols:
        out = out[:, :tables.out_cols]
    return out


if __name__ == "__main__":
    key = jax.random.PRNGKey(0)
    num_users, num_recipes, num_ingredients, num_nutrition = 50, 60, 70, 40
    embedding_dim = 32
    B = 8

    ks = jax.random.split(key, 8)
    # Deterministic parameter init (nn.Embedding default ~ N(0, 1)).
    params = {
        "user": jax.random.normal(ks[0], (num_users, embedding_dim), jnp.float32),
        "recipe": jax.random.normal(ks[1], (num_recipes, embedding_dim), jnp.float32),
        "ingredient": jax.random.normal(ks[2], (num_ingredients, embedding_dim), jnp.float32),
        "nutrition": jax.random.normal(ks[3], (num_nutrition, embedding_dim), jnp.float32),
    }

    uid = jax.random.randint(ks[4], (B,), 0, num_users, jnp.int32)
    rid = jax.random.randint(ks[5], (B,), 0, num_recipes, jnp.int32)
    ing = jax.random.randint(ks[6], (B,), 0, num_ingredients, jnp.int32)
    nut = jax.random.randint(ks[7], (B,), 0, num_nutrition, jnp.int32)

    # paths-not-None branch (the module's `paths` tensor is only checked for None).
    tables_paths = build_nla_tables(params, use_paths=True)       # built once, reused per call
    out = jax.block_until_ready(nla_forward(tables_paths, uid, rid))

    ue = params["user"][uid]
    re_ = params["recipe"][rid]
    ref = jnp.concatenate([ue, re_, ue / embedding_dim], axis=1)
    assert out.shape == (B, 3 * embedding_dim)
    assert jnp.allclose(out, ref, atol=1e-6), "paths branch mismatch"

    # paths is None branch.
    tables_flat = build_nla_tables(params, use_paths=False)
    out2 = jax.block_until_ready(nla_forward(tables_flat, uid, rid, ing, nut))
    ref2 = jnp.concatenate(
        [ue, re_, params["ingredient"][ing], params["nutrition"][nut]], axis=1)
    assert out2.shape == (B, 4 * embedding_dim)
    assert jnp.allclose(out2, ref2, atol=1e-6), "no-paths branch mismatch"

    print("KERNEL_OK")
</pallas_src>

<mosaic_0001>
module attributes {stable_mosaic.version = 11 : i64} {
  func.func @kernel(%arg0: i32, %arg1: memref<8x2xi32, #tpu.memory_space<vmem>>, %arg2: memref<110x128xf32, #tpu.memory_space<vmem>>, %arg3: memref<8x128xf32, #tpu.memory_space<vmem>>) attributes {dimension_semantics = [#tpu.dimension_semantics<parallel>], iteration_bounds = array<i64: 1>, scalar_prefetch = 0 : i64, scratch_operands = 0 : i64, tpu.core_type = #tpu.core_type<tc>, window_params = [{transform_indices = @transform_0, window_bounds = array<i64: 8, 2>}, {pipeline_mode = #tpu.pipeline_mode<synchronous>, transform_indices = @transform_1, window_bounds = array<i64: 110, 128>}, {transform_indices = @transform_2, window_bounds = array<i64: 8, 128>}]} {
    %c0 = arith.constant 0 : index
    %c0_0 = arith.constant 0 : index
    %0 = vector.load %arg1[%c0, %c0_0] : memref<8x2xi32, #tpu.memory_space<vmem>>, vector<8x2xi32>
    %1 = tpu.iota {dimensions = array<i32: 1>} : vector<8x110xi32>
    %2 = vector.extract_strided_slice %0 {offsets = [0, 0], sizes = [8, 1], strides = [1, 1]} : vector<8x2xi32> to vector<8x1xi32>
    %c0_i32 = arith.constant 0 : i32
    %3 = vector.broadcast %c0_i32 : i32 to vector<8x1xi32>
    %4 = arith.addi %2, %3 : vector<8x1xi32>
    %5 = vector.broadcast %4 : vector<8x1xi32> to vector<8x110xi32>
    %6 = arith.cmpi eq, %1, %5 : vector<8x110xi32>
    %7 = vector.extract_strided_slice %0 {offsets = [0, 1], sizes = [8, 1], strides = [1, 1]} : vector<8x2xi32> to vector<8x1xi32>
    %c50_i32 = arith.constant 50 : i32
    %8 = vector.broadcast %c50_i32 : i32 to vector<8x1xi32>
    %9 = arith.addi %7, %8 : vector<8x1xi32>
    %10 = vector.broadcast %9 : vector<8x1xi32> to vector<8x110xi32>
    %11 = arith.cmpi eq, %1, %10 : vector<8x110xi32>
    %12 = arith.ori %6, %11 : vector<8x110xi1>
    %13 = arith.extui %12 : vector<8x110xi1> to vector<8x110xi32>
    %14 = arith.sitofp %13 : vector<8x110xi32> to vector<8x110xf32>
    %c0_1 = arith.constant 0 : index
    %c0_2 = arith.constant 0 : index
    %15 = vector.load %arg2[%c0_1, %c0_2] : memref<110x128xf32, #tpu.memory_space<vmem>>, vector<110x128xf32>
    %cst = arith.constant dense<0.000000e+00> : vector<8x128xf32>
    %16 = tpu.matmul %14, %15, %cst {dimension_numbers = #tpu.dot_dimension_numbers<[1], [0], [0], [1], [0, 0, 1, 1], [], []>} : vector<8x110xf32>, vector<110x128xf32>, vector<8x128xf32> -> vector<8x128xf32>
    %c0_3 = arith.constant 0 : index
    %c0_4 = arith.constant 0 : index
    %17 = vector.load %arg3[%c0_3, %c0_4] : memref<8x128xf32, #tpu.memory_space<vmem>>, vector<8x128xf32>
    tpu.vector_store %arg3[%c0_3, %c0_4], %16 {strides = array<i32>} : memref<8x128xf32, #tpu.memory_space<vmem>>, vector<8x128xf32>,
    return
  }
  func.func @transform_0(%arg0: i32) -> (i32, i32) {
    %c0_i32 = arith.constant 0 : i32
    %c0_i32_0 = arith.constant 0 : i32
    return %arg0, %c0_i32 : i32, i32
  }
  func.func @transform_1(%arg0: i32) -> (i32, i32) {
    %c0_i32 = arith.constant 0 : i32
    %c0_i32_0 = arith.constant 0 : i32
    %c0_i32_1 = arith.constant 0 : i32
    return %c0_i32, %c0_i32_0 : i32, i32
  }
  func.func @transform_2(%arg0: i32) -> (i32, i32) {
    %c0_i32 = arith.constant 0 : i32
    %c0_i32_0 = arith.constant 0 : i32
    return %arg0, %c0_i32 : i32, i32
  }
}

</mosaic_0001>

<llo_original>
// kernel: tpu_custom_call.1
$region0: #{tpu_custom_call.1}
  #allocation0 [shape = 'u32[]', space=smem, size = 0x4, offset = 0x4, fixed_abs, tag = 'smem constant byte address 0x4 - core index']
  #allocation1 [shape = 'u32[144,128]{1,0:T(1,128)}', space=vmem, size = 0x12000, scoped, tag = 'internal scratch']
  %s0 = inlined_call_operand.vmem [shape: s32[8,2], index: 0, kind: input, shape index: {}]
  %s1 = inlined_call_operand.hbm [shape: f32[110,128], index: 1, kind: input, shape index: {}]
  %s2 = inlined_call_operand.hbm [shape: f32[8,128], index: 2, kind: output, shape index: {}]
  %s3 = sld [smem:[#allocation0]]
  $region22: #{tpu_custom_call.1} parent=0
    _
  %s5 = ssub.s32 1, %s3
  %s6 = scalar_select 0, %s5, %s3
  $region1: #{tpu_custom_call.1} parent=0
    #allocation2 [shape = 'u8[57344]{0}', space=vmem, size = 0xe000, scoped, tag = 'input window, operand 1, single buffered']
    #allocation3 [shape = 's32[1]{0}', space=sflag, size = 0x4, scoped, tag = 'scoped memory for tpu_custom_call.1']
    #allocation4 [shape = 's32[1]{0}', space=sflag, size = 0x4, scoped, tag = 'scoped memory for tpu_custom_call.1']
    #allocation5 [shape = 'u8[4096]{0}', space=vmem, size = 0x1000, scoped, tag = 'output window, operand 0, single buffered']
    %7 = vsyncpa [#allocation3], 0
    %8 = vsyncpa [#allocation4], 0
    // Predicated region
    $region2: #{tpu_custom_call.1} parent=1 // pred_check
      _
    $region3: #{tpu_custom_call.1} parent=1 // pred_check_branch
      %10 = sbr.rel (0) target = $region5
    $region4: #{tpu_custom_call.1} parent=1 // pred_region
      _
    $region5: #{tpu_custom_call.1} parent=1 // pred_fallthru
      _
    // Predicated region
    $region6: #{tpu_custom_call.1} parent=1 // pred_check
      _
    $region7: #{tpu_custom_call.1} parent=1 // pred_check_branch
      %12 = sbr.rel (0) target = $region9
    $region8: #{tpu_custom_call.1} parent=1 // pred_region
      %s14 = ssub.s32 1792, 1792
      %15 = vsyncadd [#allocation3], %s14
      %s16 = sshll.u32 [#allocation2], 4
      %s17 = int_to_ptr.vmem [resolvable:$true] %s16
      %22 = dma.hbm_to_vmem [thread:$0]  %s1, 1792, %s17, [#allocation3], 128, 128, 8
    $region9: #{tpu_custom_call.1} parent=1 // pred_fallthru
      _
    // Predicated region
    $region10: #{tpu_custom_call.1} parent=1 // pred_check
      _
    $region11: #{tpu_custom_call.1} parent=1 // pred_check_branch
      %24 = sbr.rel (0) target = $region13
    $region12: #{tpu_custom_call.1} parent=1 // pred_region
      %25 = dma.done [#allocation3], 1792
    $region13: #{tpu_custom_call.1} parent=1 // pred_fallthru
      _
    %v26 = vld [vmem:[%s0] sm:$0xff]
    %v27 = vlaneseq
    %v28 = vand.u32 %v27, 127
    %29 = vset.pattern.permute.xlu0 0
    %30 = vperm.xlu0 %29, %v26
    %v31 = vpop.permute.xlu0 %30
    %vm32 = vcmp.eq.s32.totalorder %v28, %v31
    %v33 = vadd.s32 %v26, 50
    %34 = vset.pattern.permute.xlu0 1
    %35 = vperm.xlu0 %34, %v33
    %v36 = vpop.permute.xlu0 %35
    %vm37 = vcmp.eq.s32.totalorder %v28, %v36
    %vm38 = vmor %vm32, %vm37
    %v39 = vsel %vm38, 1, 0
    %v40 = vcvt.s32.f32 %v39
    %v41 = vld [vmem:[#allocation2] sm:$0xff]
    %v42 = vld [vmem:[#allocation2 + $0x8] sm:$0xff]
    %v43 = vld [vmem:[#allocation2 + $0x10] sm:$0xff]
    %v44 = vld [vmem:[#allocation2 + $0x18] sm:$0xff]
    %v45 = vld [vmem:[#allocation2 + $0x20] sm:$0xff]
    %v46 = vld [vmem:[#allocation2 + $0x28] sm:$0xff]
    %v47 = vld [vmem:[#allocation2 + $0x30] sm:$0xff]
    %v48 = vld [vmem:[#allocation2 + $0x38] sm:$0xff]
    %v49 = vld [vmem:[#allocation2 + $0x40] sm:$0xff]
    %v50 = vld [vmem:[#allocation2 + $0x48] sm:$0xff]
    %v51 = vld [vmem:[#allocation2 + $0x50] sm:$0xff]
    %v52 = vld [vmem:[#allocation2 + $0x58] sm:$0xff]
    %v53 = vld [vmem:[#allocation2 + $0x60] sm:$0xff]
    %v54 = vld [vmem:[#allocation2 + $0x68] sm:$0x3f]
    %vm55 = vcmask 900096
    %v57 = vsel %vm55, %v40, 0
    %vm59 = vcmask 1045504
    %v61 = vsel %vm59, %v54, 0
    %63 = vmatprep.subr.mxu0 0.0
    %64 = vmatpush1.msra.mxu0 %v41
    %65 = vmatprep.subr.mxu0 0.0
    %66 = vmatpush1.msra.mxu0 %v42
    %67 = vmatprep.subr.mxu0 0.0
    %68 = vmatpush1.msra.mxu0 %v43
    %69 = vmatprep.subr.mxu0 0.0
    %70 = vmatpush1.msra.mxu0 %v44
    %71 = vmatprep.subr.mxu0 0.0
    %72 = vmatpush1.msra.mxu0 %v45
    %73 = vmatprep.subr.mxu0 0.0
    %74 = vmatpush1.msra.mxu0 %v46
    %75 = vmatprep.subr.mxu0 0.0
    %76 = vmatpush1.msra.mxu0 %v47
    %77 = vmatprep.subr.mxu0 0.0
    %78 = vmatpush1.msra.mxu0 %v48
    %79 = vmatprep.subr.mxu0 0.0
    %80 = vmatpush1.msra.mxu0 %v49
    %81 = vmatprep.subr.mxu0 0.0
    %82 = vmatpush1.msra.mxu0 %v50
    %83 = vmatprep.subr.mxu0 0.0
    %84 = vmatpush1.msra.mxu0 %v51
    %85 = vmatprep.subr.mxu0 0.0
    %86 = vmatpush1.msra.mxu0 %v52
    %87 = vmatprep.subr.mxu0 0.0
    %88 = vmatpush1.msra.mxu0 %v53
    %89 = vmatprep.subr.mxu0 0.0
    %90 = vmatpush1.msra.mxu0 %v61
    %91 = vmatprep.subr.mxu0 0.0
    %92 = vmatpush1.msra.mxu0 0.0
    %93 = vmatprep.subr.mxu0 0.0
    %94 = vmatpush1.msra.mxu0 0.0
    %95 = vmatprep.subr.mxu0 0.0
    %96 = vmatpush1.msra.mxu0 0.0
    %97 = vmatprep.subr.mxu0 0.0
    %98 = vmatpush1.msra.mxu0 0.0
    %99 = vmatprep.subr.mxu0 0.0
    %100 = vmatpush1.msra.mxu0 0.0
    %101 = vmatprep.subr.mxu0 0.0
    %102 = vmatpush1.msra.mxu0 0.0
    %103 = vmatprep.subr.mxu0 0.0
    %104 = vmatpush1.msra.mxu0 0.0
    %105 = vmatprep.subr.mxu0 0.0
    %106 = vmatpush1.msra.mxu0 0.0
    %107 = vmatprep.subr.mxu0 0.0
    %108 = vmatpush1.msra.mxu0 0.0
    %109 = vmatprep.subr.mxu0 0.0
    %110 = vmatpush1.msra.mxu0 0.0
    %111 = vmatprep.subr.mxu0 0.0
    %112 = vmatpush1.msra.mxu0 0.0
    %113 = vmatprep.subr.mxu0 0.0
    %114 = vmatpush1.msra.mxu0 0.0
    %115 = vmatprep.subr.mxu0 0.0
    %116 = vmatpush1.msra.mxu0 0.0
    %117 = vmatprep.subr.mxu0 0.0
    %118 = vmatpush1.msra.mxu0 0.0
    %119 = vmatprep.subr.mxu0 0.0
    %120 = vmatpush1.msra.mxu0 0.0
    %121 = vmatprep.subr.mxu0 0.0
    %122 = vmatpush1.msra.mxu0 0.0
    %123 = vmatprep.subr.mxu0 0.0
    %124 = vmatpush1.msra.mxu0 0.0
    %125 = vmatprep.subr.mxu0 0.0
    %126 = vmatpush1.msra.mxu0 0.0
    %127 = vmatprep.mubr.f32.mxu0 0.0
    %128 = vmatmul.mubr.f32.gmra.mrb[0].mxu0 %v57
    %v129 = vpop.f32.mrb[0].mxu0
    %v130 = vadd.f32 0.0, %v129
    %v131 = vpop.f32.mrb[0].mxu0
    %132 = vdwg.mxu0
    %133 = vst [vmem:[#allocation5] sm:$0xff] %v130
    // Predicated region
    $region14: #{tpu_custom_call.1} parent=1 // pred_check
      _
    $region15: #{tpu_custom_call.1} parent=1 // pred_check_branch
      %135 = sbr.rel (0) target = $region17
    $region16: #{tpu_custom_call.1} parent=1 // pred_region
      %s137 = ssub.s32 128, 128
      %138 = vsyncadd [#allocation4], %s137
      %s140 = sshll.u32 [#allocation5], 4
      %s141 = int_to_ptr.vmem [resolvable:$true] %s140
      %143 = dma.vmem_to_hbm [thread:$0]  %s141, 128, %s2, [#allocation4]
    $region17: #{tpu_custom_call.1} parent=1 // pred_fallthru
      _
    // Predicated region
    $region18: #{tpu_custom_call.1} parent=1 // pred_check
      _
    $region19: #{tpu_custom_call.1} parent=1 // pred_check_branch
      %145 = sbr.rel (0) target = $region21
    $region20: #{tpu_custom_call.1} parent=1 // pred_region
      %146 = dma.done [#allocation4], 128
    $region21: #{tpu_custom_call.1} parent=1 // pred_fallthru
      _
    %147 = vsyncpa [#allocation3], 1
    %148 = vsyncpa [#allocation4], 1

</llo_original>
